<compile_context>
chip_gen: v5e
topology: v5e:2x2
jax: 0.10.0
libtpu: 0.0.40
codegen_flags: <defaults>
</compile_context>

<pallas_src>
import jax
import jax.numpy as jnp
from jax.experimental import pallas as pl
from jax.experimental.pallas import tpu as pltpu


K_POWER = 2          # self.k = 2 in the PyTorch module
LANE = 128           # TPU lane width (last dim of every block)

# Below this many input bytes a single whole-array block is used: the fixed
# ~0.35 us/step pipeline overhead dominates and splitting buys nothing.
_TINY_BYTES = 128 * 1024
# Minimum pipelined grid steps above the tiny threshold: keeps the DMA/compute
# pipeline busy and gives both v7x TensorCores something to do.
_MIN_STEPS = 4


def _reluk_kernel(x_ref, o_ref):
    x = x_ref[...]
    r = jnp.maximum(x, jnp.zeros_like(x))
    # integer power k=2 -> single VPU multiply (no jnp.power / EUP involved)
    o_ref[...] = r * r


def _sublane_multiple(dtype) -> int:
    """Minimum sublane packing multiple for this dtype (vreg packing rule)."""
    itemsize = jnp.dtype(dtype).itemsize
    if itemsize >= 4:
        return 8
    if itemsize == 2:
        return 16
    return 32


def _target_block_bytes() -> int:
    """Per-buffer VMEM budget (2 in-flight input + 2 output buffers live)."""
    try:
        kind = jax.devices()[0].device_kind.lower()
    except Exception:
        kind = ""
    if "v7" in kind or "tpu7" in kind:
        # v7x: ~3.2 TB/s HBM -> bigger blocks amortize per-step overhead;
        # 4 x 4 MiB = 16 MiB stays under the 32 MiB scoped-VMEM default.
        return 4 * 1024 * 1024
    # v5e/v6e: measured elementwise sweep plateaus ~85% of roofline here and
    # 4 x 2 MiB = 8 MiB fits v5e's 16 MiB scoped-VMEM default with headroom.
    return 2 * 1024 * 1024


def _round_down(v: int, unit: int) -> int:
    return max(unit, (v // unit) * unit)


def _round_up(v: int, unit: int) -> int:
    return ((v + unit - 1) // unit) * unit


def _choose_block(extent: int, unit: int, max_block: int) -> int:
    """Block size along the tiled dim: a multiple of `unit`, <= max_block,
    >= _MIN_STEPS grid steps, best-effort even step count (v7x megacore)."""
    max_block = _round_down(max_block, unit)
    block = min(max_block, _round_down(pl.cdiv(extent, _MIN_STEPS), unit))
    steps = pl.cdiv(extent, block)
    if steps > 1 and steps % 2 == 1:
        alt = max(unit, _round_up(pl.cdiv(extent, steps + 1), unit))
        if pl.cdiv(extent, alt) % 2 == 0:
            block = alt
    return block


def _launch(x2d, block_shape, index_map, grid_len, n_elems, in_place):
    itemsize = jnp.dtype(x2d.dtype).itemsize
    extra = {"input_output_aliases": {0: 0}} if in_place else {}
    return pl.pallas_call(
        _reluk_kernel,
        out_shape=jax.ShapeDtypeStruct(x2d.shape, x2d.dtype),
        grid_spec=pltpu.PrefetchScalarGridSpec(
            num_scalar_prefetch=0,
            grid=(grid_len,),
            in_specs=[pl.BlockSpec(block_shape, index_map)],
            out_specs=pl.BlockSpec(block_shape, index_map),
        ),
        compiler_params=pltpu.CompilerParams(
            dimension_semantics=("parallel",),
        ),
        cost_estimate=pl.CostEstimate(
            flops=2 * n_elems,                       # max + mul per element
            transcendentals=0,
            bytes_accessed=2 * n_elems * itemsize,   # one read + one write
        ),
        **extra,
    )(x2d)


def reluk(x: jnp.ndarray, *, in_place: bool = False) -> jnp.ndarray:
    """Computes relu(x) ** 2 with a Pallas TPU kernel. Any shape / float dtype.

    With in_place=True the output aliases the input HBM buffer
    (pair with jax.jit(..., donate_argnums=...) in the caller).
    """
    orig_shape = x.shape
    dtype = x.dtype
    n = x.size
    if n == 0:
        return x

    itemsize = jnp.dtype(dtype).itemsize
    sub = _sublane_multiple(dtype)
    target = _target_block_bytes()
    total_bytes = n * itemsize
    x_flat = x.reshape(-1)

    if n % LANE == 0:
        # Lane-dense path: (rows, 128) slab with dense (sub,128) tiling;
        # unmasked stores everywhere except a possibly-partial last block.
        rows = n // LANE
        x2d = x_flat.reshape(rows, LANE)
        if total_bytes <= _TINY_BYTES:
            block_rows, grid_len = rows, 1   # full-extent block (divisibility waived)
        else:
            block_rows = _choose_block(rows, sub, target // (LANE * itemsize))
            grid_len = pl.cdiv(rows, block_rows)
        out2d = _launch(x2d, (block_rows, LANE), lambda i: (i, 0),
                        grid_len, n, in_place)
    else:
        # Ragged path: no jnp.pad / slice (each is a full extra HBM pass).
        # View the flat array as (1, n) and tile the lane dim; Pallas masks the
        # partial last block (safe: body is pure elementwise). VMEM per buffer
        # is block_cols * sub * itemsize (one used sublane per lane-tile), so
        # cap block_cols by the per-buffer VMEM budget, not the data bytes.
        x2d = x_flat.reshape(1, n)
        if total_bytes <= _TINY_BYTES:
            block_cols, grid_len = n, 1      # full-extent block (divisibility waived)
        else:
            block_cols = _choose_block(n, LANE, target // (sub * itemsize))
            grid_len = pl.cdiv(n, block_cols)
        out2d = _launch(x2d, (1, block_cols), lambda i: (0, i),
                        grid_len, n, in_place)

    return out2d.reshape(orig_shape)


if __name__ == "__main__":
    def _ref(v):
        return jnp.power(jnp.maximum(v, jnp.zeros_like(v)), K_POWER)

    # Primary test: the module's NCHW shape (2, 4, 16, 16) -> (16, 128) slab,
    # tiny input => single whole-array block.
    x = jax.random.normal(jax.random.PRNGKey(0), (2, 4, 16, 16), dtype=jnp.float32)
    out = reluk(x)
    jax.block_until_ready(out)
    assert out.shape == x.shape and out.dtype == x.dtype
    assert jnp.allclose(out, _ref(x), atol=1e-6, rtol=1e-6)

    # Ragged size: pad-free (1, n) path with masked partial last block.
    x2 = jax.random.normal(jax.random.PRNGKey(1), (3, 7, 61, 33), dtype=jnp.float32)
    out2 = reluk(x2)
    jax.block_until_ready(out2)
    assert jnp.allclose(out2, _ref(x2), atol=1e-6, rtol=1e-6)

    # Multi-block aligned grid (>=4 steps, even count, partial last block).
    x3 = jax.random.normal(jax.random.PRNGKey(2), (8200, 128), dtype=jnp.float32)
    out3 = reluk(x3)
    jax.block_until_ready(out3)
    assert jnp.allclose(out3, _ref(x3), atol=1e-6, rtol=1e-6)

    # bf16 (16-sublane packing) sanity; reference also computed in bf16,
    # matching PyTorch semantics (square in the input dtype).
    x5 = jax.random.normal(jax.random.PRNGKey(4), (2, 4, 16, 16)).astype(jnp.bfloat16)
    out5 = reluk(x5)
    jax.block_until_ready(out5)
    assert out5.dtype == jnp.bfloat16
    assert jnp.allclose(out5.astype(jnp.float32), _ref(x5).astype(jnp.float32),
                        atol=1e-2, rtol=1e-2)

    # In-place variant: output aliases the donated input buffer.
    x4 = jax.random.normal(jax.random.PRNGKey(3), (2, 4, 16, 16), dtype=jnp.float32)
    ref4 = _ref(x4)
    reluk_donated = jax.jit(lambda t: reluk(t, in_place=True), donate_argnums=0)
    out4 = reluk_donated(x4)
    jax.block_until_ready(out4)
    assert jnp.allclose(out4, ref4, atol=1e-6, rtol=1e-6)

    print("KERNEL_OK")
</pallas_src>

<mosaic_0001>
module attributes {stable_mosaic.version = 11 : i64} {
  func.func @_reluk_kernel(%arg0: i32, %arg1: memref<16x128xf32, #tpu.memory_space<vmem>>, %arg2: memref<16x128xf32, #tpu.memory_space<vmem>>) attributes {dimension_semantics = [#tpu.dimension_semantics<parallel>], iteration_bounds = array<i64: 1>, scalar_prefetch = 0 : i64, scratch_operands = 0 : i64, tpu.core_type = #tpu.core_type<tc>, window_params = [{transform_indices = @transform_0, window_bounds = array<i64: 16, 128>}, {transform_indices = @transform_1, window_bounds = array<i64: 16, 128>}]} {
    %c0 = arith.constant 0 : index
    %c0_0 = arith.constant 0 : index
    %0 = vector.load %arg1[%c0, %c0_0] : memref<16x128xf32, #tpu.memory_space<vmem>>, vector<16x128xf32>
    %cst = arith.constant 0.000000e+00 : f32
    %1 = vector.broadcast %cst : f32 to vector<16x128xf32>
    %2 = arith.maximumf %0, %1 : vector<16x128xf32>
    %3 = arith.mulf %2, %2 : vector<16x128xf32>
    %c0_1 = arith.constant 0 : index
    %c0_2 = arith.constant 0 : index
    %4 = vector.load %arg2[%c0_1, %c0_2] : memref<16x128xf32, #tpu.memory_space<vmem>>, vector<16x128xf32>
    tpu.vector_store %arg2[%c0_1, %c0_2], %3 {strides = array<i32>} : memref<16x128xf32, #tpu.memory_space<vmem>>, vector<16x128xf32>,
    return
  }
  func.func @transform_0(%arg0: i32) -> (i32, i32) {
    %c0_i32 = arith.constant 0 : i32
    %c0_i32_0 = arith.constant 0 : i32
    return %arg0, %c0_i32 : i32, i32
  }
  func.func @transform_1(%arg0: i32) -> (i32, i32) {
    %c0_i32 = arith.constant 0 : i32
    %c0_i32_0 = arith.constant 0 : i32
    return %arg0, %c0_i32 : i32, i32
  }
}

</mosaic_0001>

<llo_original>
// kernel: tpu_custom_call.1
$region0: #{tpu_custom_call.1}
  #allocation0 [shape = 'u32[]', space=smem, size = 0x4, offset = 0x4, fixed_abs, tag = 'smem constant byte address 0x4 - core index']
  #allocation1 [shape = 'u32[72,128]{1,0:T(1,128)}', space=vmem, size = 0x9000, scoped, tag = 'internal scratch']
  %s0 = inlined_call_operand.hbm [shape: f32[16,128], index: 0, kind: input, shape index: {}]
  %s1 = inlined_call_operand.hbm [shape: f32[16,128], index: 1, kind: output, shape index: {}]
  %s2 = sld [smem:[#allocation0]]
  $region18: #{tpu_custom_call.1} parent=0
    _
  %s4 = ssub.s32 1, %s2
  %s5 = scalar_select 0, %s4, %s2
  $region1: #{tpu_custom_call.1} parent=0
    #allocation2 [shape = 'u8[8192]{0}', space=vmem, size = 0x2000, scoped, tag = 'input window, operand 0, single buffered']
    #allocation3 [shape = 's32[1]{0}', space=sflag, size = 0x4, scoped, tag = 'scoped memory for tpu_custom_call.1']
    #allocation4 [shape = 's32[1]{0}', space=sflag, size = 0x4, scoped, tag = 'scoped memory for tpu_custom_call.1']
    #allocation5 [shape = 'u8[8192]{0}', space=vmem, size = 0x2000, scoped, tag = 'output window, operand 0, single buffered']
    %6 = vsyncpa [#allocation3], 0
    %7 = vsyncpa [#allocation4], 0
    // Predicated region
    $region2: #{tpu_custom_call.1} parent=1 // pred_check
      _
    $region3: #{tpu_custom_call.1} parent=1 // pred_check_branch
      %9 = sbr.rel (0) target = $region5
    $region4: #{tpu_custom_call.1} parent=1 // pred_region
      %11 = vsyncadd [#allocation3], 0
      %s12 = sshll.u32 %s0, 4
      %s13 = int_to_ptr.hbm [resolvable:$true] %s12
      %s14 = sshll.u32 [#allocation2], 4
      %s15 = int_to_ptr.vmem [resolvable:$true] %s14
      %20 = dma.hbm_to_vmem [thread:$0]  %s13, 256, %s15, [#allocation3], 128, 128, 8
    $region5: #{tpu_custom_call.1} parent=1 // pred_fallthru
      _
    // Predicated region
    $region6: #{tpu_custom_call.1} parent=1 // pred_check
      _
    $region7: #{tpu_custom_call.1} parent=1 // pred_check_branch
      %22 = sbr.rel (0) target = $region9
    $region8: #{tpu_custom_call.1} parent=1 // pred_region
      %24 = dma.done [#allocation3], 256
    $region9: #{tpu_custom_call.1} parent=1 // pred_fallthru
      _
    %v25 = vld [vmem:[#allocation2] sm:$0xff]
    %v26 = vld [vmem:[#allocation2 + $0x8] sm:$0xff]
    %v27 = vmax.f32 %v25, 0.0
    %v28 = vmax.f32 %v26, 0.0
    %v29 = vmul.f32 %v27, %v27
    %v30 = vmul.f32 %v28, %v28
    %31 = vst [vmem:[#allocation5] sm:$0xff] %v29
    %32 = vst [vmem:[#allocation5 + $0x8] sm:$0xff] %v30
    // Predicated region
    $region10: #{tpu_custom_call.1} parent=1 // pred_check
      _
    $region11: #{tpu_custom_call.1} parent=1 // pred_check_branch
      %34 = sbr.rel (0) target = $region13
    $region12: #{tpu_custom_call.1} parent=1 // pred_region
      %36 = vsyncadd [#allocation4], 0
      %s37 = sshll.u32 [#allocation5], 4
      %s38 = int_to_ptr.vmem [resolvable:$true] %s37
      %s39 = sshll.u32 %s1, 4
      %s40 = int_to_ptr.hbm [resolvable:$true] %s39
      %45 = dma.vmem_to_hbm [thread:$0]  %s38, 256, %s40, [#allocation4], 128, 128, 8
    $region13: #{tpu_custom_call.1} parent=1 // pred_fallthru
      _
    // Predicated region
    $region14: #{tpu_custom_call.1} parent=1 // pred_check
      _
    $region15: #{tpu_custom_call.1} parent=1 // pred_check_branch
      %47 = sbr.rel (0) target = $region17
    $region16: #{tpu_custom_call.1} parent=1 // pred_region
      %49 = dma.done [#allocation4], 256
    $region17: #{tpu_custom_call.1} parent=1 // pred_fallthru
      _
    %50 = vsyncpa [#allocation3], 1
    %51 = vsyncpa [#allocation4], 1

</llo_original>
